<compile_context>
chip_gen: v6e
topology: v6e:2x2x1
jax: 0.10.0
libtpu: 0.0.40
codegen_flags: <defaults>
</compile_context>

<pallas_src>
import jax
import jax.numpy as jnp
from jax.experimental import pallas as pl
from jax.experimental.pallas import tpu as pltpu

_LANE = 128
_SUB = 8
_MAX_TILE_ROWS = 2048        # 2048*128 px per channel per step (~6 MiB dbl-buffered)
_MAX_FLAT_PIXELS = 1 << 16   # ragged-HW single-block path VMEM cap


def _round_up(v, m):
    return ((v + m - 1) // m) * m


def _mix_gelu(xs, w_ref, b_ref, o):
    """Channel mix (VPU broadcast FMAs, weights from SMEM) + exact erf GELU."""
    acc = xs[0] * w_ref[0, o] + b_ref[o]
    for c in range(1, len(xs)):
        acc = acc + w_ref[c, o] * xs[c]
    # Exact (erf-based) GELU, identical to the PyTorch forward's formulation.
    return (acc * 0.5) * (jax.lax.erf(acc * 0.7071067811865476) + 1.0)


def _kernel_tiled(w_ref, b_ref, x_ref, o_ref):
    # w_ref: (C, O) f32 SMEM (scalar prefetch); b_ref: (O,) f32 SMEM.
    # x_ref: (1, C, T, 128) f32 VMEM; o_ref: (1, O, T, 128) f32 VMEM.
    C = x_ref.shape[1]
    O = o_ref.shape[1]
    xs = [x_ref[0, c] for c in range(C)]
    for o in range(O):
        o_ref[0, o] = _mix_gelu(xs, w_ref, b_ref, o).astype(o_ref.dtype)


def _kernel_flat(w_ref, b_ref, x_ref, o_ref):
    # x_ref: (1, C, HW) f32 VMEM; o_ref: (1, O, HW) f32 VMEM.
    # Keep-dims slices keep everything 2D for clean vreg layouts.
    C = x_ref.shape[1]
    O = o_ref.shape[1]
    xs = [x_ref[0, c:c + 1, :] for c in range(C)]
    for o in range(O):
        o_ref[0, o:o + 1, :] = _mix_gelu(xs, w_ref, b_ref, o).astype(o_ref.dtype)


def _choose_tile_rows(rows, n_batch):
    if rows <= _SUB:
        return rows                      # full-extent block (legal even if < 8)
    if n_batch == 1:
        base = pl.cdiv(rows, 2)          # expose >=2 pixel tiles for v7x's 2 TCs
    else:
        base = rows                      # batch axis already feeds both cores
    return max(_SUB, (min(base, _MAX_TILE_ROWS) // _SUB) * _SUB)


def _run_tiled(w2d, b1d, x4, O):
    N, C, rows, _ = x4.shape
    tile_rows = _choose_tile_rows(rows, N)
    grid = (N, pl.cdiv(rows, tile_rows))   # partial final block handled by Pallas
    return pl.pallas_call(
        _kernel_tiled,
        out_shape=jax.ShapeDtypeStruct((N, O, rows, _LANE), jnp.float32),
        grid_spec=pltpu.PrefetchScalarGridSpec(
            num_scalar_prefetch=2,
            grid=grid,
            in_specs=[pl.BlockSpec((1, C, tile_rows, _LANE),
                                   lambda n, i, w, b: (n, 0, i, 0))],
            out_specs=pl.BlockSpec((1, O, tile_rows, _LANE),
                                   lambda n, i, w, b: (n, 0, i, 0)),
        ),
        compiler_params=pltpu.CompilerParams(
            dimension_semantics=("parallel", "parallel")),
    )(w2d, b1d, x4)


def _run_flat(w2d, b1d, x3, O):
    N, C, HW = x3.shape
    return pl.pallas_call(
        _kernel_flat,
        out_shape=jax.ShapeDtypeStruct((N, O, HW), jnp.float32),
        grid_spec=pltpu.PrefetchScalarGridSpec(
            num_scalar_prefetch=2,
            grid=(N,),
            in_specs=[pl.BlockSpec((1, C, HW), lambda n, w, b: (n, 0, 0))],
            out_specs=pl.BlockSpec((1, O, HW), lambda n, w, b: (n, 0, 0)),
        ),
        compiler_params=pltpu.CompilerParams(
            dimension_semantics=("parallel",)),
    )(w2d, b1d, x3)


@jax.jit
def model_forward(x, weight, bias):
    """x: (N, C, H, W) f32; weight: (C, O, 1, 1) (PyTorch ConvTranspose2d layout);
    bias: (O,). Returns GELU(ConvTranspose2d_1x1(x)) with shape (N, O, H, W)."""
    N, C, H, W = x.shape
    O = weight.shape[1]
    HW = H * W

    x = x.astype(jnp.float32)
    # PyTorch ConvTranspose2d weight is (C_in, C_out, 1, 1); keep (C, O) layout and
    # index w_ref[c, o] in-kernel -- no transpose HLO.
    w2d = weight.reshape(C, O).astype(jnp.float32)
    b1d = bias.reshape(O).astype(jnp.float32)

    if HW % _LANE == 0:
        # Fast path: pixel axis folds into a lane-dense (rows, 128) slab via a
        # bitcast reshape -- no pad / slice HBM round-trips.
        rows = HW // _LANE
        out4 = _run_tiled(w2d, b1d, x.reshape(N, C, rows, _LANE), O)
        return out4.reshape(N, O, H, W)

    if HW <= _MAX_FLAT_PIXELS:
        # Ragged small/medium HW (covers the spec's 30x19): one full-pixel block
        # per batch element; only bitcast reshapes around a single pallas_call.
        out3 = _run_flat(w2d, b1d, x.reshape(N, C, HW), O)
        return out3.reshape(N, O, H, W)

    # Large ragged HW fallback: minimal (<128 px) lane pad, cdiv row grid (no
    # tile-multiple row padding), slice the padded lanes off afterwards.
    rows = pl.cdiv(HW, _LANE)
    Mp = rows * _LANE
    x3 = jnp.pad(x.reshape(N, C, HW), ((0, 0), (0, 0), (0, Mp - HW)))
    out4 = _run_tiled(w2d, b1d, x3.reshape(N, C, rows, _LANE), O)
    return out4.reshape(N, O, Mp)[:, :, :HW].reshape(N, O, H, W)


def _reference(x, weight, bias):
    C, O = weight.shape[0], weight.shape[1]
    v1 = jnp.einsum("nchw,co->nohw", x, weight.reshape(C, O)) + bias.reshape(1, O, 1, 1)
    return (v1 * 0.5) * (jax.lax.erf(v1 * 0.7071067811865476) + 1.0)


if __name__ == "__main__":
    key = jax.random.PRNGKey(0)
    kx, kw, kb, kx2 = jax.random.split(key, 4)

    # Shapes from the PyTorch spec: x1 = randn(1, 2, 30, 19);
    # ConvTranspose2d(2, 1, 1) -> weight (2, 1, 1, 1), bias (1,).
    x1 = jax.random.normal(kx, (1, 2, 30, 19), dtype=jnp.float32)
    weight = jax.random.normal(kw, (2, 1, 1, 1), dtype=jnp.float32) * 0.5
    bias = jax.random.normal(kb, (1,), dtype=jnp.float32) * 0.1

    out = model_forward(x1, weight, bias)
    jax.block_until_ready(out)
    assert out.shape == (1, 1, 30, 19)
    assert jnp.allclose(out, _reference(x1, weight, bias), atol=1e-5, rtol=1e-5)

    # Also exercise the lane-dense tiled path (HW % 128 == 0, N == 1 -> 2 tiles).
    x2 = jax.random.normal(kx2, (1, 2, 32, 64), dtype=jnp.float32)
    out2 = model_forward(x2, weight, bias)
    jax.block_until_ready(out2)
    assert out2.shape == (1, 1, 32, 64)
    assert jnp.allclose(out2, _reference(x2, weight, bias), atol=1e-5, rtol=1e-5)

    print("KERNEL_OK")
</pallas_src>

<mosaic_0001>
module attributes {stable_mosaic.version = 11 : i64} {
  func.func @_kernel_flat(%arg0: i32, %arg1: memref<2x1xf32, #tpu.memory_space<smem>>, %arg2: memref<1xf32, #tpu.memory_space<smem>>, %arg3: memref<1x2x570xf32, #tpu.memory_space<vmem>>, %arg4: memref<1x1x570xf32, #tpu.memory_space<vmem>>) attributes {dimension_semantics = [#tpu.dimension_semantics<parallel>], iteration_bounds = array<i64: 1>, scalar_prefetch = 2 : i64, scratch_operands = 0 : i64, tpu.core_type = #tpu.core_type<tc>, window_params = [{transform_indices = @transform_0, window_bounds = array<i64: 1, 2, 570>}, {transform_indices = @transform_1, window_bounds = array<i64: 1, 1, 570>}]} {
    %c0 = arith.constant 0 : index
    %c0_0 = arith.constant 0 : index
    %c0_1 = arith.constant 0 : index
    %0 = vector.load %arg3[%c0, %c0_0, %c0_1] : memref<1x2x570xf32, #tpu.memory_space<vmem>>, vector<1x1x570xf32>
    %1 = vector.shape_cast %0 : vector<1x1x570xf32> to vector<1x570xf32>
    %c0_2 = arith.constant 0 : index
    %c1 = arith.constant 1 : index
    %c0_3 = arith.constant 0 : index
    %2 = vector.load %arg3[%c0_2, %c1, %c0_3] : memref<1x2x570xf32, #tpu.memory_space<vmem>>, vector<1x1x570xf32>
    %3 = vector.shape_cast %2 : vector<1x1x570xf32> to vector<1x570xf32>
    %c0_4 = arith.constant 0 : index
    %c0_5 = arith.constant 0 : index
    %4 = memref.load %arg1[%c0_4, %c0_5] : memref<2x1xf32, #tpu.memory_space<smem>>
    %5 = vector.broadcast %4 : f32 to vector<1x570xf32>
    %6 = arith.mulf %1, %5 : vector<1x570xf32>
    %c0_6 = arith.constant 0 : index
    %7 = memref.load %arg2[%c0_6] : memref<1xf32, #tpu.memory_space<smem>>
    %8 = vector.broadcast %7 : f32 to vector<1x570xf32>
    %9 = arith.addf %6, %8 : vector<1x570xf32>
    %c1_7 = arith.constant 1 : index
    %c0_8 = arith.constant 0 : index
    %10 = memref.load %arg1[%c1_7, %c0_8] : memref<2x1xf32, #tpu.memory_space<smem>>
    %11 = vector.broadcast %10 : f32 to vector<1x570xf32>
    %12 = arith.mulf %11, %3 : vector<1x570xf32>
    %13 = arith.addf %9, %12 : vector<1x570xf32>
    %cst = arith.constant 5.000000e-01 : f32
    %14 = vector.broadcast %cst : f32 to vector<1x570xf32>
    %15 = arith.mulf %13, %14 : vector<1x570xf32>
    %cst_9 = arith.constant 0.707106769 : f32
    %16 = vector.broadcast %cst_9 : f32 to vector<1x570xf32>
    %17 = arith.mulf %13, %16 : vector<1x570xf32>
    %18 = math.erf %17 : vector<1x570xf32>
    %cst_10 = arith.constant 1.000000e+00 : f32
    %19 = vector.broadcast %cst_10 : f32 to vector<1x570xf32>
    %20 = arith.addf %18, %19 : vector<1x570xf32>
    %21 = arith.mulf %15, %20 : vector<1x570xf32>
    %c0_11 = arith.constant 0 : index
    %c0_12 = arith.constant 0 : index
    %c0_13 = arith.constant 0 : index
    %22 = vector.load %arg4[%c0_11, %c0_12, %c0_13] : memref<1x1x570xf32, #tpu.memory_space<vmem>>, vector<1x1x570xf32>
    %23 = vector.shape_cast %22 : vector<1x1x570xf32> to vector<1x570xf32>
    %24 = vector.shape_cast %21 : vector<1x570xf32> to vector<1x1x570xf32>
    tpu.vector_store %arg4[%c0_11, %c0_12, %c0_13], %24 {strides = array<i32>} : memref<1x1x570xf32, #tpu.memory_space<vmem>>, vector<1x1x570xf32>,
    return
  }
  func.func @transform_0(%arg0: i32, %arg1: memref<2x1xf32, #tpu.memory_space<smem>>, %arg2: memref<1xf32, #tpu.memory_space<smem>>) -> (i32, i32, i32) {
    %c0_i32 = arith.constant 0 : i32
    %c0_i32_0 = arith.constant 0 : i32
    %c0_i32_1 = arith.constant 0 : i32
    return %arg0, %c0_i32, %c0_i32_0 : i32, i32, i32
  }
  func.func @transform_1(%arg0: i32, %arg1: memref<2x1xf32, #tpu.memory_space<smem>>, %arg2: memref<1xf32, #tpu.memory_space<smem>>) -> (i32, i32, i32) {
    %c0_i32 = arith.constant 0 : i32
    %c0_i32_0 = arith.constant 0 : i32
    %c0_i32_1 = arith.constant 0 : i32
    return %arg0, %c0_i32, %c0_i32_0 : i32, i32, i32
  }
}

</mosaic_0001>

<llo_original>
// kernel: model_forward.1
$region0: #{model_forward.1}
  #allocation0 [shape = 'u32[]', space=smem, size = 0x4, offset = 0x4, fixed_abs, tag = 'smem constant byte address 0x4 - core index']
  #allocation1 [shape = 'u32[144,128]{1,0:T(1,128)}', space=vmem, size = 0x12000, scoped, tag = 'internal scratch']
  #allocation2 [shape = 's32[1]{0}', space=sflag, size = 0x4, scoped, tag = 'scoped memory for model_forward.1']
  #allocation3 [shape = 'u8[1024]{0}', space=smem, size = 0x400, scoped, tag = 'prefetched SMEM operand 0']
  #allocation4 [shape = 'f32[1]{0:T(128)S(6)}', space=smem, size = 0x200, scoped, tag = 'prefetched SMEM operand 1']
  %s0 = inlined_call_operand.vmem [shape: f32[2,1], index: 0, kind: input, shape index: {}]
  %s1 = inlined_call_operand.<no memory space> [shape: f32[1], index: 1, kind: input, shape index: {}]
  %s2 = inlined_call_operand.vmem [shape: f32[1,2,570], index: 2, kind: input, shape index: {}]
  %s3 = inlined_call_operand.vmem [shape: f32[1,1,570], index: 3, kind: output, shape index: {}]
  %s4 = sld [smem:[#allocation0]]
  $region14: #{model_forward.1} parent=0
    _
  %s6 = ssub.s32 1, %s4
  %s7 = scalar_select 0, %s6, %s4
  %s8 = sshll.u32 %s0, 4
  %s9 = int_to_ptr.vmem [resolvable:$true] %s8
  %11 = dma.vmem_to_smem %s9, 32, [#allocation3], [#allocation2]
  %12 = sst [smem:[#allocation4]] %s1
  %13 = dma.done [#allocation2], 32
  %14 = sfence
  // Predicated region
  $region2: #{model_forward.1} parent=0 // pred_check
    _
  $region3: #{model_forward.1} parent=0 // pred_check_branch
    %16 = sbr.rel (0) target = $region5
  $region4: #{model_forward.1} parent=0 // pred_region
    _
  $region5: #{model_forward.1} parent=0 // pred_fallthru
    _
  %v17 = vld [vmem:[%s2] ss:$2 sm:$0x1f]
  %s18 = scalar_lea.vmem %s2, 1
  %v19 = vld [vmem:[%s18] ss:$2 sm:$0x1f]
  %s20 = sld [smem:[#allocation3]]
  %v21 = vstv %s20
  %v22 = vmul.f32 %v17, %v21
  %s23 = sld [smem:[#allocation4]]
  %v24 = vstv %s23
  %v25 = vadd.f32 %v22, %v24
  %s26 = sld [smem:[#allocation3 + $0x80]]
  %v27 = vstv %s26
  %v28 = vmul.f32 %v27, %v19
  %v29 = vadd.f32 %v25, %v28
  %v30 = vmul.f32 %v29, 0.5
  %v31 = vmul.f32 %v29, 0.70710677
  %v32 = verf.f32.pop %v31
  %v33 = vadd.f32 %v32, 1.0
  %v34 = vmul.f32 %v30, %v33
  %v35 = vlaneseq
  %vm36 = vcmp.ge.s32.totalorder %v35, 0
  %vm37 = vcmp.lt.s32.totalorder %v35, 570
  %vm38 = vmand %vm36, %vm37
  %39 = vst.msk [vmem:[%s3] sm:$0x1f] %vm38, %v34
  // Predicated region
  $region6: #{model_forward.1} parent=0 // pred_check
    _
  $region7: #{model_forward.1} parent=0 // pred_check_branch
    %41 = sbr.rel (0) target = $region9
  $region8: #{model_forward.1} parent=0 // pred_region
    _
  $region9: #{model_forward.1} parent=0 // pred_fallthru
    _
  // Predicated region
  $region10: #{model_forward.1} parent=0 // pred_check
    _
  $region11: #{model_forward.1} parent=0 // pred_check_branch
    %43 = sbr.rel (0) target = $region13
  $region12: #{model_forward.1} parent=0 // pred_region
    _
  $region13: #{model_forward.1} parent=0 // pred_fallthru
    _

</llo_original>
